<compile_context>
chip_gen: v7x
topology: tpu7x:2x2x1
jax: 0.10.0
libtpu: 0.0.40
codegen_flags: <defaults>
</compile_context>

<pallas_src>
import jax
import jax.numpy as jnp
from jax.experimental import pallas as pl
from jax.experimental.pallas import tpu as pltpu

INPUT_DIM = 128
HIDDEN_DIM = 32
DROPOUT_RATE = 0.3   # eval-mode dropout is identity
TILE_B = 256         # batch lanes per grid step (fills the v6e/v7x MXU width)
BATCH = 200          # example batch (deliberately not a multiple of TILE_B)


def disaster_classifier_kernel(xt_ref, w1t_ref, b1_ref, w2_ref, b2_ref, o_ref):
    # fc1 on the MXU, batch on lanes: (H, IN) @ (IN, TILE_B) -> (H, TILE_B).
    # x arrives f32; cast to bf16 here (halves x HBM traffic vs a wrapper pass),
    # accumulate in f32.
    x_bf16 = xt_ref[...].astype(jnp.bfloat16)
    h = jnp.dot(w1t_ref[...], x_bf16, preferred_element_type=jnp.float32)
    h = jnp.maximum(h + b1_ref[...], 0.0)                 # bias + ReLU (VPU, f32)
    # TODO(synk): training-mode dropout (rate=0.3) via pltpu.prng_random_bits is
    # not implemented; eval-mode dropout is identity, which matches inference.
    # fc2: per-hidden-unit multiply + sublane reduction -> (1, TILE_B) logits.
    logits = jnp.sum(h * w2_ref[...], axis=0, keepdims=True) + b2_ref[0]
    # Sigmoid: exp on the EUP; approx reciprocal also on the EUP (VALU stays free).
    o_ref[...] = pl.reciprocal(1.0 + jnp.exp(-logits), approx=True)


def disaster_classifier(x, w1, b1, w2, b2, *, tile_b=TILE_B):
    batch, in_dim = x.shape
    hidden = w1.shape[1]
    grid_b = pl.cdiv(batch, tile_b)
    batch_pad = grid_b * tile_b

    # Batch-on-lanes layout. x^T padded along the batch (lane) axis, kept in f32;
    # weights reshaped once (tiny) so hidden lands on sublanes (no 32->128 pad).
    x_t = jnp.zeros((in_dim, batch_pad), jnp.float32).at[:, :batch].set(
        x.astype(jnp.float32).T)
    w1_t = w1.T.astype(jnp.bfloat16)                       # (H, IN) MXU operand
    b1_c = b1.reshape(hidden, 1).astype(jnp.float32)       # (H, 1) bias column
    w2_c = w2.reshape(hidden, 1).astype(jnp.float32)       # (H, 1) fc2 column
    b2_s = b2.reshape(1).astype(jnp.float32)               # SMEM scalar

    cost = pl.CostEstimate(
        flops=2 * batch_pad * in_dim * hidden + 2 * batch_pad * hidden,
        transcendentals=batch_pad,                          # one exp per example
        bytes_accessed=in_dim * batch_pad * 4 + hidden * in_dim * 2
        + batch_pad * 4,
    )

    out = pl.pallas_call(
        disaster_classifier_kernel,
        out_shape=jax.ShapeDtypeStruct((grid_b, tile_b), jnp.float32),
        grid_spec=pltpu.PrefetchScalarGridSpec(
            num_scalar_prefetch=0,
            grid=(grid_b,),
            in_specs=[
                pl.BlockSpec((in_dim, tile_b), lambda i: (0, i)),   # x^T tile
                pl.BlockSpec((hidden, in_dim), lambda i: (0, 0)),   # w1^T (resident)
                pl.BlockSpec((hidden, 1), lambda i: (0, 0)),        # b1 column
                pl.BlockSpec((hidden, 1), lambda i: (0, 0)),        # w2 column
                pl.BlockSpec(memory_space=pltpu.MemorySpace.SMEM),  # b2 scalar
            ],
            out_specs=pl.BlockSpec((1, tile_b), lambda i: (i, 0)),
        ),
        compiler_params=pltpu.CompilerParams(
            dimension_semantics=("parallel",)),  # batch tiles shard across TCs (v7x)
        cost_estimate=cost,
    )(x_t, w1_t, b1_c, w2_c, b2_s)

    # (grid_b, tile_b) -> (batch_pad,) is a pure view; drop the padded tail rows.
    return out.reshape(batch_pad)[:batch].reshape(batch, 1)


def reference_forward(x, w1, b1, w2, b2):
    h = jnp.maximum(x @ w1 + b1, 0.0)
    return jax.nn.sigmoid(h @ w2 + b2)


if __name__ == "__main__":
    key = jax.random.PRNGKey(0)
    kx, k1, k2, k3, k4 = jax.random.split(key, 5)

    # Deterministic inputs / PyTorch-Linear-style uniform init.
    x = jax.random.normal(kx, (BATCH, INPUT_DIM), dtype=jnp.float32)
    bound1 = 1.0 / (INPUT_DIM ** 0.5)
    w1 = jax.random.uniform(k1, (INPUT_DIM, HIDDEN_DIM), jnp.float32, -bound1, bound1)
    b1 = jax.random.uniform(k2, (HIDDEN_DIM,), jnp.float32, -bound1, bound1)
    bound2 = 1.0 / (HIDDEN_DIM ** 0.5)
    w2 = jax.random.uniform(k3, (HIDDEN_DIM, 1), jnp.float32, -bound2, bound2)
    b2 = jax.random.uniform(k4, (1,), jnp.float32, -bound2, bound2)

    out = disaster_classifier(x, w1, b1, w2, b2)
    out = jax.block_until_ready(out)

    ref = reference_forward(x, w1, b1, w2, b2)
    assert out.shape == (BATCH, 1)
    # bf16 fc1 + approx-reciprocal sigmoid vs pure-f32 reference -> loose tolerance.
    assert jnp.allclose(out, ref, atol=1e-2, rtol=1e-2), \
        float(jnp.max(jnp.abs(out - ref)))

    print("KERNEL_OK")
</pallas_src>

<mosaic_0001>
module attributes {stable_mosaic.version = 11 : i64} {
  func.func @disaster_classifier_kernel(%arg0: i32, %arg1: memref<128x256xf32, #tpu.memory_space<vmem>>, %arg2: memref<32x128xbf16, #tpu.memory_space<vmem>>, %arg3: memref<32x1xf32, #tpu.memory_space<vmem>>, %arg4: memref<32x1xf32, #tpu.memory_space<vmem>>, %arg5: memref<1xf32, #tpu.memory_space<smem>>, %arg6: memref<1x256xf32, #tpu.memory_space<vmem>>) attributes {dimension_semantics = [#tpu.dimension_semantics<parallel>], iteration_bounds = array<i64: 1>, scalar_prefetch = 0 : i64, scratch_operands = 0 : i64, tpu.core_type = #tpu.core_type<tc>, window_params = [{transform_indices = @transform_0, window_bounds = array<i64: 128, 256>}, {pipeline_mode = #tpu.pipeline_mode<synchronous>, transform_indices = @transform_1, window_bounds = array<i64: 32, 128>}, {pipeline_mode = #tpu.pipeline_mode<synchronous>, transform_indices = @transform_2, window_bounds = array<i64: 32, 1>}, {pipeline_mode = #tpu.pipeline_mode<synchronous>, transform_indices = @transform_3, window_bounds = array<i64: 32, 1>}, {transform_indices = @transform_4, window_bounds = array<i64: 1>}, {transform_indices = @transform_5, window_bounds = array<i64: 1, 256>}]} {
    %c0 = arith.constant 0 : index
    %c0_0 = arith.constant 0 : index
    %0 = vector.load %arg1[%c0, %c0_0] : memref<128x256xf32, #tpu.memory_space<vmem>>, vector<128x256xf32>
    %1 = arith.truncf %0 : vector<128x256xf32> to vector<128x256xbf16>
    %c0_1 = arith.constant 0 : index
    %c0_2 = arith.constant 0 : index
    %2 = vector.load %arg2[%c0_1, %c0_2] : memref<32x128xbf16, #tpu.memory_space<vmem>>, vector<32x128xbf16>
    %cst = arith.constant dense<0.000000e+00> : vector<32x256xf32>
    %3 = tpu.matmul %2, %1, %cst {dimension_numbers = #tpu.dot_dimension_numbers<[1], [0], [0], [1], [0, 0, 1, 1], [], []>} : vector<32x128xbf16>, vector<128x256xbf16>, vector<32x256xf32> -> vector<32x256xf32>
    %c0_3 = arith.constant 0 : index
    %c0_4 = arith.constant 0 : index
    %4 = vector.load %arg3[%c0_3, %c0_4] : memref<32x1xf32, #tpu.memory_space<vmem>>, vector<32x1xf32>
    %5 = vector.broadcast %4 : vector<32x1xf32> to vector<32x256xf32>
    %6 = arith.addf %3, %5 : vector<32x256xf32>
    %cst_5 = arith.constant 0.000000e+00 : f32
    %7 = vector.broadcast %cst_5 : f32 to vector<32x256xf32>
    %8 = arith.maximumf %6, %7 : vector<32x256xf32>
    %c0_6 = arith.constant 0 : index
    %c0_7 = arith.constant 0 : index
    %9 = vector.load %arg4[%c0_6, %c0_7] : memref<32x1xf32, #tpu.memory_space<vmem>>, vector<32x1xf32>
    %10 = vector.broadcast %9 : vector<32x1xf32> to vector<32x256xf32>
    %11 = arith.mulf %8, %10 : vector<32x256xf32>
    %cst_8 = arith.constant dense<0.000000e+00> : vector<256xf32>
    %12 = vector.multi_reduction <add>, %11, %cst_8 [0] : vector<32x256xf32> to vector<256xf32>
    %13 = vector.shape_cast %12 : vector<256xf32> to vector<1x256xf32>
    %c0_9 = arith.constant 0 : index
    %14 = memref.load %arg5[%c0_9] : memref<1xf32, #tpu.memory_space<smem>>
    %15 = vector.broadcast %14 : f32 to vector<1x256xf32>
    %16 = arith.addf %13, %15 : vector<1x256xf32>
    %cst_10 = arith.constant 0.000000e+00 : f32
    %17 = vector.broadcast %cst_10 : f32 to vector<1x256xf32>
    %18 = arith.subf %17, %16 : vector<1x256xf32>
    %19 = math.exp %18 : vector<1x256xf32>
    %cst_11 = arith.constant 1.000000e+00 : f32
    %20 = vector.broadcast %cst_11 : f32 to vector<1x256xf32>
    %21 = arith.addf %20, %19 : vector<1x256xf32>
    %22 = tpu.reciprocal %21 {approx = true} : vector<1x256xf32> -> vector<1x256xf32>
    %c0_12 = arith.constant 0 : index
    %c0_13 = arith.constant 0 : index
    %23 = vector.load %arg6[%c0_12, %c0_13] : memref<1x256xf32, #tpu.memory_space<vmem>>, vector<1x256xf32>
    tpu.vector_store %arg6[%c0_12, %c0_13], %22 {strides = array<i32>} : memref<1x256xf32, #tpu.memory_space<vmem>>, vector<1x256xf32>,
    return
  }
  func.func @transform_0(%arg0: i32) -> (i32, i32) {
    %c0_i32 = arith.constant 0 : i32
    %c0_i32_0 = arith.constant 0 : i32
    return %c0_i32, %arg0 : i32, i32
  }
  func.func @transform_1(%arg0: i32) -> (i32, i32) {
    %c0_i32 = arith.constant 0 : i32
    %c0_i32_0 = arith.constant 0 : i32
    %c0_i32_1 = arith.constant 0 : i32
    return %c0_i32, %c0_i32_0 : i32, i32
  }
  func.func @transform_2(%arg0: i32) -> (i32, i32) {
    %c0_i32 = arith.constant 0 : i32
    %c0_i32_0 = arith.constant 0 : i32
    %c0_i32_1 = arith.constant 0 : i32
    return %c0_i32, %c0_i32_0 : i32, i32
  }
  func.func @transform_3(%arg0: i32) -> (i32, i32) {
    %c0_i32 = arith.constant 0 : i32
    %c0_i32_0 = arith.constant 0 : i32
    %c0_i32_1 = arith.constant 0 : i32
    return %c0_i32, %c0_i32_0 : i32, i32
  }
  func.func @transform_4(%arg0: i32) -> i32 {
    %c0_i32 = arith.constant 0 : i32
    %c0_i32_0 = arith.constant 0 : i32
    return %c0_i32 : i32
  }
  func.func @transform_5(%arg0: i32) -> (i32, i32) {
    %c0_i32 = arith.constant 0 : i32
    %c0_i32_0 = arith.constant 0 : i32
    return %arg0, %c0_i32 : i32, i32
  }
}

</mosaic_0001>

<llo_original>
// kernel: tpu_custom_call.1
$region0: #{tpu_custom_call.1}
  #allocation0 [shape = 'u32[]', space=smem, size = 0x4, offset = 0x4, fixed_abs, tag = 'smem constant byte address 0x4 - core index']
  #allocation1 [shape = 'u32[144,128]{1,0:T(1,128)}', space=vmem, size = 0x12000, scoped, tag = 'internal scratch']
  #allocation2 [shape = 'f32[1]{0:T(128)S(6)}', space=smem, size = 0x200, scoped, tag = 'scoped memory for tpu_custom_call.1']
  %s0 = inlined_call_operand.hbm [shape: f32[128,256], index: 0, kind: input, shape index: {}]
  %s1 = inlined_call_operand.vmem [shape: bf16[32,128], index: 1, kind: input, shape index: {}]
  %s2 = inlined_call_operand.vmem [shape: f32[32,1], index: 2, kind: input, shape index: {}]
  %s3 = inlined_call_operand.vmem [shape: f32[32,1], index: 3, kind: input, shape index: {}]
  %s4 = inlined_call_operand.<no memory space> [shape: f32[1], index: 4, kind: input, shape index: {}]
  %s5 = inlined_call_operand.hbm [shape: f32[1,256], index: 5, kind: output, shape index: {}]
  %s6 = sld [smem:[#allocation0]]
  $region34: #{tpu_custom_call.1} parent=0
    _
  %s8 = ssub.s32 1, %s6
  %s9 = scalar_select 0, %s8, %s6
  %10 = sst [smem:[#allocation2]] %s4
  $region1: #{tpu_custom_call.1} parent=0
    #allocation3 [shape = 'u8[131072]{0}', space=vmem, size = 0x20000, scoped, tag = 'input window, operand 0, single buffered']
    #allocation4 [shape = 's32[1]{0}', space=sflag, size = 0x4, scoped, tag = 'scoped memory for tpu_custom_call.1']
    #allocation5 [shape = 's32[1]{0}', space=sflag, size = 0x4, scoped, tag = 'scoped memory for tpu_custom_call.1']
    #allocation6 [shape = 'u8[1024]{0}', space=vmem, size = 0x400, scoped, tag = 'output window, operand 0, single buffered']
    %11 = vsyncpa [#allocation4], 0
    %12 = vsyncpa [#allocation5], 0
    // Predicated region
    $region2: #{tpu_custom_call.1} parent=1 // pred_check
      _
    $region3: #{tpu_custom_call.1} parent=1 // pred_check_branch
      %14 = sbr.rel (0) target = $region5
    $region4: #{tpu_custom_call.1} parent=1 // pred_region
      %s16 = ssub.s32 4096, 4096
      %17 = vsyncadd [#allocation4], %s16
      %s18 = sshll.u32 [#allocation3], 4
      %s19 = int_to_ptr.vmem [resolvable:$true] %s18
      %24 = dma.hbm_to_vmem [thread:$0]  %s0, 4096, %s19, [#allocation4], 256, 256, 16
    $region5: #{tpu_custom_call.1} parent=1 // pred_fallthru
      _
    // Predicated region
    $region6: #{tpu_custom_call.1} parent=1 // pred_check
      _
    $region7: #{tpu_custom_call.1} parent=1 // pred_check_branch
      %26 = sbr.rel (0) target = $region9
    $region8: #{tpu_custom_call.1} parent=1 // pred_region
      _
    $region9: #{tpu_custom_call.1} parent=1 // pred_fallthru
      _
    // Predicated region
    $region10: #{tpu_custom_call.1} parent=1 // pred_check
      _
    $region11: #{tpu_custom_call.1} parent=1 // pred_check_branch
      %28 = sbr.rel (0) target = $region13
    $region12: #{tpu_custom_call.1} parent=1 // pred_region
      _
    $region13: #{tpu_custom_call.1} parent=1 // pred_fallthru
      _
    // Predicated region
    $region14: #{tpu_custom_call.1} parent=1 // pred_check
      _
    $region15: #{tpu_custom_call.1} parent=1 // pred_check_branch
      %30 = sbr.rel (0) target = $region17
    $region16: #{tpu_custom_call.1} parent=1 // pred_region
      _
    $region17: #{tpu_custom_call.1} parent=1 // pred_fallthru
      _
    // Predicated region
    $region18: #{tpu_custom_call.1} parent=1 // pred_check
      _
    $region19: #{tpu_custom_call.1} parent=1 // pred_check_branch
      %32 = sbr.rel (0) target = $region21
    $region20: #{tpu_custom_call.1} parent=1 // pred_region
      _
    $region21: #{tpu_custom_call.1} parent=1 // pred_fallthru
      _
    // Predicated region
    $region22: #{tpu_custom_call.1} parent=1 // pred_check
      _
    $region23: #{tpu_custom_call.1} parent=1 // pred_check_branch
      %34 = sbr.rel (0) target = $region25
    $region24: #{tpu_custom_call.1} parent=1 // pred_region
      %35 = dma.done [#allocation4], 4096
    $region25: #{tpu_custom_call.1} parent=1 // pred_fallthru
      _
    %v37 = vld [vmem:[#allocation3] sm:$0xff]
    %v38 = vld [vmem:[#allocation3 + $0x8] sm:$0xff]
    %v39 = vld [vmem:[#allocation3 + $0x10] sm:$0xff]
    %v40 = vld [vmem:[#allocation3 + $0x18] sm:$0xff]
    %v41 = vld [vmem:[#allocation3 + $0x20] sm:$0xff]
    %v42 = vld [vmem:[#allocation3 + $0x28] sm:$0xff]
    %v43 = vld [vmem:[#allocation3 + $0x30] sm:$0xff]
    %v44 = vld [vmem:[#allocation3 + $0x38] sm:$0xff]
    %v45 = vld [vmem:[#allocation3 + $0x40] sm:$0xff]
    %v46 = vld [vmem:[#allocation3 + $0x48] sm:$0xff]
    %v47 = vld [vmem:[#allocation3 + $0x50] sm:$0xff]
    %v48 = vld [vmem:[#allocation3 + $0x58] sm:$0xff]
    %v49 = vld [vmem:[#allocation3 + $0x60] sm:$0xff]
    %v50 = vld [vmem:[#allocation3 + $0x68] sm:$0xff]
    %v51 = vld [vmem:[#allocation3 + $0x70] sm:$0xff]
    %v52 = vld [vmem:[#allocation3 + $0x78] sm:$0xff]
    %v53 = vld [vmem:[#allocation3 + $0x80] sm:$0xff]
    %v54 = vld [vmem:[#allocation3 + $0x88] sm:$0xff]
    %v55 = vld [vmem:[#allocation3 + $0x90] sm:$0xff]
    %v56 = vld [vmem:[#allocation3 + $0x98] sm:$0xff]
    %v57 = vld [vmem:[#allocation3 + $0xa0] sm:$0xff]
    %v58 = vld [vmem:[#allocation3 + $0xa8] sm:$0xff]
    %v59 = vld [vmem:[#allocation3 + $0xb0] sm:$0xff]
    %v60 = vld [vmem:[#allocation3 + $0xb8] sm:$0xff]
    %v61 = vld [vmem:[#allocation3 + $0xc0] sm:$0xff]
    %v62 = vld [vmem:[#allocation3 + $0xc8] sm:$0xff]
    %v63 = vld [vmem:[#allocation3 + $0xd0] sm:$0xff]
    %v64 = vld [vmem:[#allocation3 + $0xd8] sm:$0xff]
    %v65 = vld [vmem:[#allocation3 + $0xe0] sm:$0xff]
    %v66 = vld [vmem:[#allocation3 + $0xe8] sm:$0xff]
    %v67 = vld [vmem:[#allocation3 + $0xf0] sm:$0xff]
    %v68 = vld [vmem:[#allocation3 + $0xf8] sm:$0xff]
    %v69 = vpack.c.bf16 %v39, %v37
    %v70 = vpack.c.bf16 %v40, %v38
    %v71 = vpack.c.bf16 %v43, %v41
    %v72 = vpack.c.bf16 %v44, %v42
    %v73 = vpack.c.bf16 %v47, %v45
    %v74 = vpack.c.bf16 %v48, %v46
    %v75 = vpack.c.bf16 %v51, %v49
    %v76 = vpack.c.bf16 %v52, %v50
    %v77 = vpack.c.bf16 %v55, %v53
    %v78 = vpack.c.bf16 %v56, %v54
    %v79 = vpack.c.bf16 %v59, %v57
    %v80 = vpack.c.bf16 %v60, %v58
    %v81 = vpack.c.bf16 %v63, %v61
    %v82 = vpack.c.bf16 %v64, %v62
    %v83 = vpack.c.bf16 %v67, %v65
    %v84 = vpack.c.bf16 %v68, %v66
    %v85 = vld [vmem:[%s1] sm:$0xf]
    %v86 = vld [vmem:[%s1 + $0x4] sm:$0xf]
    %v87 = vld [vmem:[%s1 + $0x8] sm:$0xf]
    %v88 = vld [vmem:[%s1 + $0xc] sm:$0xf]
    %v89 = vld [vmem:[%s2] sm:$0xff]
    %v90 = vld [vmem:[%s2 + $0x8] sm:$0xff]
    %v91 = vld [vmem:[%s2 + $0x10] sm:$0xff]
    %v92 = vld [vmem:[%s2 + $0x18] sm:$0xff]
    %94 = vset.pattern.permute.xlu0 0
    %95 = vperm.xlu0 %94, %v89
    %v96 = vpop.permute.xlu0 %95
    %99 = vset.pattern.permute.xlu0 0
    %100 = vperm.xlu0 %99, %v90
    %v101 = vpop.permute.xlu0 %100
    %104 = vset.pattern.permute.xlu0 0
    %105 = vperm.xlu0 %104, %v91
    %v106 = vpop.permute.xlu0 %105
    %109 = vset.pattern.permute.xlu0 0
    %110 = vperm.xlu0 %109, %v92
    %v111 = vpop.permute.xlu0 %110
    %v117 = vunpack.c.l.b16 %v85
    %v118 = vunpack.c.l.b16 %v86
    %v119 = vunpack.c.l.b16 %v87
    %v120 = vunpack.c.l.b16 %v88
    %v121 = vpack.c.b16 %v118, %v117
    %v122 = vpack.c.b16 %v120, %v119
    %125 = vmatprep.subr.bf16.mxu0 %v70
    %126 = vmatpush1.bf16.msra.mxu0 %v69
    %127 = vmatprep.subr.bf16.mxu0 %v72
    %128 = vmatpush1.bf16.msra.mxu0 %v71
    %129 = vmatprep.subr.bf16.mxu0 %v74
    %130 = vmatpush1.bf16.msra.mxu0 %v73
    %131 = vmatprep.subr.bf16.mxu0 %v76
    %132 = vmatpush1.bf16.msra.mxu0 %v75
    %133 = vmatprep.subr.bf16.mxu0 %v78
    %134 = vmatpush1.bf16.msra.mxu0 %v77
    %135 = vmatprep.subr.bf16.mxu0 %v80
    %136 = vmatpush1.bf16.msra.mxu0 %v79
    %137 = vmatprep.subr.bf16.mxu0 %v82
    %138 = vmatpush1.bf16.msra.mxu0 %v81
    %139 = vmatprep.subr.bf16.mxu0 %v84
    %140 = vmatpush1.bf16.msra.mxu0 %v83
    %141 = vmatprep.subr.bf16.mxu0 0
    %142 = vmatpush1.bf16.msra.mxu0 0
    %143 = vmatprep.subr.bf16.mxu0 0
    %144 = vmatpush1.bf16.msra.mxu0 0
    %145 = vmatprep.subr.bf16.mxu0 0
    %146 = vmatpush1.bf16.msra.mxu0 0
    %147 = vmatprep.subr.bf16.mxu0 0
    %148 = vmatpush1.bf16.msra.mxu0 0
    %149 = vmatprep.subr.bf16.mxu0 0
    %150 = vmatpush1.bf16.msra.mxu0 0
    %151 = vmatprep.subr.bf16.mxu0 0
    %152 = vmatpush1.bf16.msra.mxu0 0
    %153 = vmatprep.subr.bf16.mxu0 0
    %154 = vmatpush1.bf16.msra.mxu0 0
    %155 = vmatprep.subr.bf16.mxu0 0
    %156 = vmatpush1.bf16.msra.mxu0 0
    %157 = vmatprep.mubr.bf16.mxu0 0
    %158 = vmatmul.mubr.bf16.gmra.mrb[0].mxu0 %v121
    %v159 = vpop.f32.mrb[0].mxu0
    %v160 = vadd.f32 %v96, %v159
    %v161 = vpop.f32.mrb[0].mxu0
    %v162 = vadd.f32 %v96, %v161
    %v163 = vpop.f32.mrb[0].mxu0
    %v164 = vadd.f32 %v101, %v163
    %v165 = vpop.f32.mrb[0].mxu0
    %v166 = vadd.f32 %v101, %v165
    %167 = vmatprep.mubr.bf16.mxu0 0
    %168 = vmatmul.mubr.bf16.gmra.mrb[0].mxu0 %v122
    %v169 = vpop.f32.mrb[0].mxu0
    %v170 = vadd.f32 %v106, %v169
    %v171 = vpop.f32.mrb[0].mxu0
    %v172 = vadd.f32 %v106, %v171
    %v173 = vpop.f32.mrb[0].mxu0
    %v174 = vadd.f32 %v111, %v173
    %v175 = vpop.f32.mrb[0].mxu0
    %v176 = vadd.f32 %v111, %v175
    %177 = vdwg.mxu0
    %v178 = vmax.f32 %v160, 0.0
    %v179 = vmax.f32 %v162, 0.0
    %v180 = vmax.f32 %v164, 0.0
    %v181 = vmax.f32 %v166, 0.0
    %v182 = vmax.f32 %v170, 0.0
    %v183 = vmax.f32 %v172, 0.0
    %v184 = vmax.f32 %v174, 0.0
    %v185 = vmax.f32 %v176, 0.0
    %v186 = vld [vmem:[%s3] sm:$0xff]
    %v187 = vld [vmem:[%s3 + $0x8] sm:$0xff]
    %v188 = vld [vmem:[%s3 + $0x10] sm:$0xff]
    %v189 = vld [vmem:[%s3 + $0x18] sm:$0xff]
    %191 = vset.pattern.permute.xlu0 0
    %192 = vperm.xlu0 %191, %v186
    %v193 = vpop.permute.xlu0 %192
    %196 = vset.pattern.permute.xlu0 0
    %197 = vperm.xlu0 %196, %v187
    %v198 = vpop.permute.xlu0 %197
    %201 = vset.pattern.permute.xlu0 0
    %202 = vperm.xlu0 %201, %v188
    %v203 = vpop.permute.xlu0 %202
    %206 = vset.pattern.permute.xlu0 0
    %207 = vperm.xlu0 %206, %v189
    %v208 = vpop.permute.xlu0 %207
    %v210 = vmul.f32 %v178, %v193
    %v211 = vmul.f32 %v179, %v193
    %v212 = vmul.f32 %v180, %v198
    %v213 = vmul.f32 %v181, %v198
    %v214 = vmul.f32 %v182, %v203
    %v215 = vmul.f32 %v183, %v203
    %v216 = vmul.f32 %v184, %v208
    %v217 = vmul.f32 %v185, %v208
    %v218 = vadd.f32 %v210, %v212
    %v219 = vadd.f32 %v218, %v214
    %v220 = vadd.f32 %v219, %v216
    %v221 = vrot.slane %v220, 4
    %v222 = vadd.f32 %v220, %v221
    %v223 = vrot.slane %v222, 2
    %v224 = vadd.f32 %v222, %v223
    %v225 = vrot.slane %v224, 1
    %v226 = vadd.f32 %v224, %v225
    %v227 = vadd.f32 %v211, %v213
    %v228 = vadd.f32 %v227, %v215
    %v229 = vadd.f32 %v228, %v217
    %v230 = vrot.slane %v229, 4
    %v231 = vadd.f32 %v229, %v230
    %v232 = vrot.slane %v231, 2
    %v233 = vadd.f32 %v231, %v232
    %v234 = vrot.slane %v233, 1
    %v235 = vadd.f32 %v233, %v234
    %s236 = sld [smem:[#allocation2]]
    %v237 = vstv %s236
    %v238 = vadd.f32 %v226, %v237
    %v239 = vadd.f32 %v235, %v237
    %v240 = vsub.f32 0.0, %v238
    %v241 = vsub.f32 0.0, %v239
    %v242 = vmul.f32 %v240, 1.442695
    %v243 = vpow.pop %v242
    %v244 = vmul.f32 %v241, 1.442695
    %v245 = vpow.pop %v244
    %v246 = vadd.f32 %v243, 1.0
    %v247 = vadd.f32 %v245, 1.0
    %v248 = vrcp.pop %v246
    %v249 = vrcp.pop %v247
    %v252 = vcombine.low %v248, %v249
    %v254 = vunpack.c.l.s4 1966171168
    %v255 = vunpack.c.0.s8 %v254
    %v256 = vlaneseq
    %v257 = vshrl.u32 %v256, 7
    %v258 = vsub.s32 %v255, %v257
    %v259 = vrot.slane %v252, %v258
    %v261 = vunpack.c.l.s4 1966171168
    %v262 = vunpack.c.0.s8 %v261
    %v263 = vlaneseq
    %v264 = vshrl.u32 %v263, 7
    %v265 = vsub.s32 %v262, %v264
    %v266 = vrot.slane %v259, %v265
    %v268 = vlaneseq
    %vm269 = vcmp.ge.s32.totalorder %v268, 0
    %vm270 = vcmp.lt.s32.totalorder %v268, 256
    %vm271 = vmand %vm269, %vm270
    %272 = vst.msk [vmem:[#allocation6] sm:$0x3] %vm271, %v266
    // Predicated region
    $region26: #{tpu_custom_call.1} parent=1 // pred_check
      _
    $region27: #{tpu_custom_call.1} parent=1 // pred_check_branch
      %274 = sbr.rel (0) target = $region29
    $region28: #{tpu_custom_call.1} parent=1 // pred_region
      %s276 = ssub.s32 32, 32
      %277 = vsyncadd [#allocation5], %s276
      %s279 = sshll.u32 [#allocation6], 4
      %s280 = int_to_ptr.vmem [resolvable:$true] %s279
      %282 = dma.vmem_to_hbm [thread:$0]  %s280, 32, %s5, [#allocation5]
    $region29: #{tpu_custom_call.1} parent=1 // pred_fallthru
      _
    // Predicated region
    $region30: #{tpu_custom_call.1} parent=1 // pred_check
      _
    $region31: #{tpu_custom_call.1} parent=1 // pred_check_branch
      %284 = sbr.rel (0) target = $region33
    $region32: #{tpu_custom_call.1} parent=1 // pred_region
      %285 = dma.done [#allocation5], 32
    $region33: #{tpu_custom_call.1} parent=1 // pred_fallthru
      _
    %286 = vsyncpa [#allocation4], 1
    %287 = vsyncpa [#allocation5], 1

</llo_original>
